<compile_context>
chip_gen: v7x
topology: tpu7x:2x2x1
jax: 0.10.0
libtpu: 0.0.40
codegen_flags: <defaults>
</compile_context>

<pallas_src>
import functools

import jax
import jax.numpy as jnp
from jax.experimental import pallas as pl
from jax.experimental.pallas import tpu as pltpu


def _rmsnorm_gated_kernel(x_ref, gate_ref, w_ref, o_ref, *, n_groups, eps):
    # x_ref/gate_ref: (ROWS, D) tiles; w_ref: (1, D) resident; o_ref: (ROWS, D).
    x = x_ref[...].astype(jnp.float32)
    g = gate_ref[...].astype(jnp.float32)
    # gated: hidden * silu(gate)   (sigmoid goes to the EUP slot -> cheap)
    x = x * (g * jax.nn.sigmoid(g))

    rows, d = x.shape
    dg = d // n_groups
    inv_dg = 1.0 / dg
    x2 = x * x

    if n_groups == 1:
        # whole-row reduce (XLU) ; rsqrt on EUP
        ssq = jnp.sum(x2, axis=-1, keepdims=True)                 # (rows, 1)
        inv_full = jax.lax.rsqrt(ssq * inv_dg + eps)              # broadcasts over lanes
    else:
        # Lane-dense per-group reduction: mask the lanes of each group and do a
        # full-row sum, then scatter the per-group rsqrt back with the same
        # (1, D) mask.  Avoids (rows, g, dg) reshapes that would cross the
        # (8,128) vreg tiling and force XLU relayouts.  n_groups is small for
        # Mamba (1..8), so the static unroll is cheap and hidden under the
        # memory-bound pipeline.
        lane = jax.lax.broadcasted_iota(jnp.int32, (1, d), 1)     # (1, D) column index
        inv_full = jnp.zeros((rows, d), jnp.float32)
        for gi in range(n_groups):
            lo = gi * dg
            mask = (lane >= lo) & (lane < lo + dg)                # (1, D)
            ssq_g = jnp.sum(jnp.where(mask, x2, 0.0), axis=-1, keepdims=True)  # (rows, 1)
            inv_g = jax.lax.rsqrt(ssq_g * inv_dg + eps)           # (rows, 1)
            inv_full = jnp.where(mask, inv_g, inv_full)           # (rows, D)

    o_ref[...] = (w_ref[...].astype(jnp.float32) * (x * inv_full)).astype(o_ref.dtype)


def mamba_rmsnorm_gated(hidden_states, gate, weight, *, n_groups=1, eps=1e-5,
                        rmsnorm_within_groups=True, row_block=None, out_dtype=None,
                        vmem_limit_bytes=48 << 20):
    """Pallas TPU implementation of MambaRMSNormGated.forward.

    Default out_dtype=float32 matches the module (hidden cast to f32, weight is f32).
    Pass out_dtype=hidden_states.dtype to halve output HBM write traffic if desired.
    """
    # TODO(synk): parallel_split() tensor-parallel weight slicing is host-side
    # parameter surgery (distributed setup), not part of the forward kernel.
    orig_shape = hidden_states.shape
    d = orig_shape[-1]
    assert gate.shape == orig_shape
    assert weight.shape == (d,)
    g_eff = n_groups if rmsnorm_within_groups else 1
    assert d % g_eff == 0

    if out_dtype is None:
        out_dtype = jnp.float32

    x2d = hidden_states.reshape(-1, d)
    g2d = gate.reshape(-1, d)
    n = x2d.shape[0]

    if row_block is None:
        in_bytes = x2d.dtype.itemsize + g2d.dtype.itemsize
        out_bytes = jnp.dtype(out_dtype).itemsize
        # Per-row VMEM footprint: double-buffered input + output tiles plus
        # ~6 f32 full-tile intermediates inside the kernel.  Budget ~36 MiB of
        # the 48 MiB scoped limit so the same sizing works on v5e/v6e (128 MiB
        # physical VMEM) and v7x (64 MiB physical).
        per_row = d * (2 * in_bytes + 2 * out_bytes + 6 * 4)
        row_block = max(8, min(1024, (36 << 20) // max(per_row, 1)))
    # Keep at least 2 grid steps when possible so v7x can split rows over its 2 TCs.
    row_block = min(row_block, max(8, pl.cdiv(n, 2)))
    row_block = max(8, (row_block // 8) * 8)  # sublane multiple

    # No host-side padding: cdiv grid, Pallas masks the ragged last block's writes.
    grid = (pl.cdiv(n, row_block),)
    w2 = weight.reshape(1, d)

    # NOTE: for real deployments D should be a multiple of 128 so output stores
    # are full-lane (unmasked vst); the toy D=32 below is just for the self-test.
    kernel = functools.partial(_rmsnorm_gated_kernel, n_groups=g_eff, eps=float(eps))

    out = pl.pallas_call(
        kernel,
        out_shape=jax.ShapeDtypeStruct((n, d), out_dtype),
        grid_spec=pltpu.PrefetchScalarGridSpec(
            num_scalar_prefetch=0,
            grid=grid,
            in_specs=[
                pl.BlockSpec((row_block, d), lambda i: (i, 0)),
                pl.BlockSpec((row_block, d), lambda i: (i, 0)),
                pl.BlockSpec((1, d), lambda i: (0, 0)),   # weight stays resident
            ],
            out_specs=pl.BlockSpec((row_block, d), lambda i: (i, 0)),
        ),
        compiler_params=pltpu.CompilerParams(
            dimension_semantics=("parallel",),
            vmem_limit_bytes=vmem_limit_bytes,
        ),
    )(x2d, g2d, w2)

    return out.reshape(orig_shape)


def _reference(hidden_states, gate, weight, *, n_groups, eps, rmsnorm_within_groups=True):
    hs = hidden_states.astype(jnp.float32)
    gt = gate.astype(jnp.float32)
    shape = hs.shape
    d = shape[-1]
    g_eff = n_groups if rmsnorm_within_groups else 1
    hs = hs.reshape(shape[:-1] + (g_eff, d // g_eff))
    gt = gt.reshape(shape[:-1] + (g_eff, d // g_eff))
    hs = hs * (gt * jax.nn.sigmoid(gt))
    var = jnp.mean(hs * hs, axis=-1, keepdims=True)
    hs = hs * jax.lax.rsqrt(var + eps)
    hs = hs.reshape(shape)
    return weight.astype(jnp.float32) * hs


if __name__ == "__main__":
    key = jax.random.PRNGKey(0)
    k1, k2 = jax.random.split(key)

    batch, seq, d, n_groups = 2, 8, 32, 4
    eps = 1e-5

    hidden_states = jax.random.normal(k1, (batch, seq, d), dtype=jnp.float32)
    gate = jax.random.normal(k2, (batch, seq, d), dtype=jnp.float32)
    weight = jnp.ones((d,), jnp.float32) + 0.01 * jnp.arange(d, dtype=jnp.float32)

    # 1) grouped RMSNorm path
    out = mamba_rmsnorm_gated(hidden_states, gate, weight, n_groups=n_groups, eps=eps)
    out = jax.block_until_ready(out)
    ref = _reference(hidden_states, gate, weight, n_groups=n_groups, eps=eps)
    assert out.shape == (batch, seq, d)
    assert out.dtype == jnp.float32
    assert jnp.allclose(out, ref, atol=1e-5, rtol=1e-5), "mismatch vs reference (grouped)"

    # 2) ungrouped path (rmsnorm_within_groups=False -> single group)
    out1 = mamba_rmsnorm_gated(hidden_states, gate, weight, n_groups=n_groups, eps=eps,
                               rmsnorm_within_groups=False)
    out1 = jax.block_until_ready(out1)
    ref1 = _reference(hidden_states, gate, weight, n_groups=n_groups, eps=eps,
                      rmsnorm_within_groups=False)
    assert jnp.allclose(out1, ref1, atol=1e-5, rtol=1e-5), "mismatch vs reference (ungrouped)"

    # 3) ragged row count (N not divisible by row_block) exercises the cdiv grid
    hs_r = jax.random.normal(k1, (batch, seq + 1, d), dtype=jnp.float32)
    gt_r = jax.random.normal(k2, (batch, seq + 1, d), dtype=jnp.float32)
    out_r = mamba_rmsnorm_gated(hs_r, gt_r, weight, n_groups=n_groups, eps=eps)
    out_r = jax.block_until_ready(out_r)
    ref_r = _reference(hs_r, gt_r, weight, n_groups=n_groups, eps=eps)
    assert jnp.allclose(out_r, ref_r, atol=1e-5, rtol=1e-5), "mismatch vs reference (ragged)"

    print("KERNEL_OK")
</pallas_src>

<mosaic_0001>
module attributes {stable_mosaic.version = 11 : i64} {
  func.func @_rmsnorm_gated_kernel(%arg0: i32, %arg1: memref<8x32xf32, #tpu.memory_space<vmem>>, %arg2: memref<8x32xf32, #tpu.memory_space<vmem>>, %arg3: memref<1x32xf32, #tpu.memory_space<vmem>>, %arg4: memref<8x32xf32, #tpu.memory_space<vmem>>) attributes {dimension_semantics = [#tpu.dimension_semantics<parallel>], iteration_bounds = array<i64: 2>, scalar_prefetch = 0 : i64, scratch_operands = 0 : i64, tpu.core_type = #tpu.core_type<tc>, window_params = [{transform_indices = @transform_0, window_bounds = array<i64: 8, 32>}, {transform_indices = @transform_1, window_bounds = array<i64: 8, 32>}, {pipeline_mode = #tpu.pipeline_mode<synchronous>, transform_indices = @transform_2, window_bounds = array<i64: 1, 32>}, {transform_indices = @transform_3, window_bounds = array<i64: 8, 32>}]} {
    %c0 = arith.constant 0 : index
    %c0_0 = arith.constant 0 : index
    %0 = vector.load %arg1[%c0, %c0_0] : memref<8x32xf32, #tpu.memory_space<vmem>>, vector<8x32xf32>
    %c0_1 = arith.constant 0 : index
    %c0_2 = arith.constant 0 : index
    %1 = vector.load %arg2[%c0_1, %c0_2] : memref<8x32xf32, #tpu.memory_space<vmem>>, vector<8x32xf32>
    %2 = arith.negf %1 : vector<8x32xf32>
    %3 = math.exp %2 : vector<8x32xf32>
    %cst = arith.constant 1.000000e+00 : f32
    %4 = vector.broadcast %cst : f32 to vector<8x32xf32>
    %5 = arith.addf %4, %3 : vector<8x32xf32>
    %6 = arith.divf %4, %5 : vector<8x32xf32>
    %7 = arith.mulf %1, %6 : vector<8x32xf32>
    %8 = arith.mulf %0, %7 : vector<8x32xf32>
    %9 = arith.mulf %8, %8 : vector<8x32xf32>
    %10 = tpu.iota {dimensions = array<i32: 1>} : vector<1x32xi32>
    %cst_3 = arith.constant 0.000000e+00 : f32
    %11 = vector.broadcast %cst_3 : f32 to vector<8x32xf32>
    %c0_i32 = arith.constant 0 : i32
    %12 = vector.broadcast %c0_i32 : i32 to vector<1x32xi32>
    %13 = arith.cmpi sge, %10, %12 : vector<1x32xi32>
    %c8_i32 = arith.constant 8 : i32
    %14 = vector.broadcast %c8_i32 : i32 to vector<1x32xi32>
    %15 = arith.cmpi slt, %10, %14 : vector<1x32xi32>
    %16 = arith.andi %13, %15 : vector<1x32xi1>
    %cst_4 = arith.constant 0.000000e+00 : f32
    %17 = vector.shape_cast %16 : vector<1x32xi1> to vector<1x32xi1>
    %18 = vector.broadcast %17 : vector<1x32xi1> to vector<8x32xi1>
    %19 = vector.broadcast %cst_4 : f32 to vector<8x32xf32>
    %20 = arith.select %18, %9, %19 : vector<8x32xi1>, vector<8x32xf32>
    %cst_5 = arith.constant dense<0.000000e+00> : vector<8xf32>
    %21 = vector.multi_reduction <add>, %20, %cst_5 [1] : vector<8x32xf32> to vector<8xf32>
    %22 = vector.shape_cast %21 : vector<8xf32> to vector<8x1xf32>
    %cst_6 = arith.constant 1.250000e-01 : f32
    %23 = vector.broadcast %cst_6 : f32 to vector<8x1xf32>
    %24 = arith.mulf %22, %23 : vector<8x1xf32>
    %cst_7 = arith.constant 9.99999974E-6 : f32
    %25 = vector.broadcast %cst_7 : f32 to vector<8x1xf32>
    %26 = arith.addf %24, %25 : vector<8x1xf32>
    %27 = math.rsqrt %26 : vector<8x1xf32>
    %28 = vector.shape_cast %16 : vector<1x32xi1> to vector<1x32xi1>
    %29 = vector.broadcast %28 : vector<1x32xi1> to vector<8x32xi1>
    %30 = vector.shape_cast %27 : vector<8x1xf32> to vector<8x1xf32>
    %31 = vector.broadcast %30 : vector<8x1xf32> to vector<8x32xf32>
    %32 = arith.select %29, %31, %11 : vector<8x32xi1>, vector<8x32xf32>
    %c8_i32_8 = arith.constant 8 : i32
    %33 = vector.broadcast %c8_i32_8 : i32 to vector<1x32xi32>
    %34 = arith.cmpi sge, %10, %33 : vector<1x32xi32>
    %c16_i32 = arith.constant 16 : i32
    %35 = vector.broadcast %c16_i32 : i32 to vector<1x32xi32>
    %36 = arith.cmpi slt, %10, %35 : vector<1x32xi32>
    %37 = arith.andi %34, %36 : vector<1x32xi1>
    %cst_9 = arith.constant 0.000000e+00 : f32
    %38 = vector.shape_cast %37 : vector<1x32xi1> to vector<1x32xi1>
    %39 = vector.broadcast %38 : vector<1x32xi1> to vector<8x32xi1>
    %40 = vector.broadcast %cst_9 : f32 to vector<8x32xf32>
    %41 = arith.select %39, %9, %40 : vector<8x32xi1>, vector<8x32xf32>
    %cst_10 = arith.constant dense<0.000000e+00> : vector<8xf32>
    %42 = vector.multi_reduction <add>, %41, %cst_10 [1] : vector<8x32xf32> to vector<8xf32>
    %43 = vector.shape_cast %42 : vector<8xf32> to vector<8x1xf32>
    %cst_11 = arith.constant 1.250000e-01 : f32
    %44 = vector.broadcast %cst_11 : f32 to vector<8x1xf32>
    %45 = arith.mulf %43, %44 : vector<8x1xf32>
    %cst_12 = arith.constant 9.99999974E-6 : f32
    %46 = vector.broadcast %cst_12 : f32 to vector<8x1xf32>
    %47 = arith.addf %45, %46 : vector<8x1xf32>
    %48 = math.rsqrt %47 : vector<8x1xf32>
    %49 = vector.shape_cast %37 : vector<1x32xi1> to vector<1x32xi1>
    %50 = vector.broadcast %49 : vector<1x32xi1> to vector<8x32xi1>
    %51 = vector.shape_cast %48 : vector<8x1xf32> to vector<8x1xf32>
    %52 = vector.broadcast %51 : vector<8x1xf32> to vector<8x32xf32>
    %53 = arith.select %50, %52, %32 : vector<8x32xi1>, vector<8x32xf32>
    %c16_i32_13 = arith.constant 16 : i32
    %54 = vector.broadcast %c16_i32_13 : i32 to vector<1x32xi32>
    %55 = arith.cmpi sge, %10, %54 : vector<1x32xi32>
    %c24_i32 = arith.constant 24 : i32
    %56 = vector.broadcast %c24_i32 : i32 to vector<1x32xi32>
    %57 = arith.cmpi slt, %10, %56 : vector<1x32xi32>
    %58 = arith.andi %55, %57 : vector<1x32xi1>
    %cst_14 = arith.constant 0.000000e+00 : f32
    %59 = vector.shape_cast %58 : vector<1x32xi1> to vector<1x32xi1>
    %60 = vector.broadcast %59 : vector<1x32xi1> to vector<8x32xi1>
    %61 = vector.broadcast %cst_14 : f32 to vector<8x32xf32>
    %62 = arith.select %60, %9, %61 : vector<8x32xi1>, vector<8x32xf32>
    %cst_15 = arith.constant dense<0.000000e+00> : vector<8xf32>
    %63 = vector.multi_reduction <add>, %62, %cst_15 [1] : vector<8x32xf32> to vector<8xf32>
    %64 = vector.shape_cast %63 : vector<8xf32> to vector<8x1xf32>
    %cst_16 = arith.constant 1.250000e-01 : f32
    %65 = vector.broadcast %cst_16 : f32 to vector<8x1xf32>
    %66 = arith.mulf %64, %65 : vector<8x1xf32>
    %cst_17 = arith.constant 9.99999974E-6 : f32
    %67 = vector.broadcast %cst_17 : f32 to vector<8x1xf32>
    %68 = arith.addf %66, %67 : vector<8x1xf32>
    %69 = math.rsqrt %68 : vector<8x1xf32>
    %70 = vector.shape_cast %58 : vector<1x32xi1> to vector<1x32xi1>
    %71 = vector.broadcast %70 : vector<1x32xi1> to vector<8x32xi1>
    %72 = vector.shape_cast %69 : vector<8x1xf32> to vector<8x1xf32>
    %73 = vector.broadcast %72 : vector<8x1xf32> to vector<8x32xf32>
    %74 = arith.select %71, %73, %53 : vector<8x32xi1>, vector<8x32xf32>
    %c24_i32_18 = arith.constant 24 : i32
    %75 = vector.broadcast %c24_i32_18 : i32 to vector<1x32xi32>
    %76 = arith.cmpi sge, %10, %75 : vector<1x32xi32>
    %c32_i32 = arith.constant 32 : i32
    %77 = vector.broadcast %c32_i32 : i32 to vector<1x32xi32>
    %78 = arith.cmpi slt, %10, %77 : vector<1x32xi32>
    %79 = arith.andi %76, %78 : vector<1x32xi1>
    %cst_19 = arith.constant 0.000000e+00 : f32
    %80 = vector.shape_cast %79 : vector<1x32xi1> to vector<1x32xi1>
    %81 = vector.broadcast %80 : vector<1x32xi1> to vector<8x32xi1>
    %82 = vector.broadcast %cst_19 : f32 to vector<8x32xf32>
    %83 = arith.select %81, %9, %82 : vector<8x32xi1>, vector<8x32xf32>
    %cst_20 = arith.constant dense<0.000000e+00> : vector<8xf32>
    %84 = vector.multi_reduction <add>, %83, %cst_20 [1] : vector<8x32xf32> to vector<8xf32>
    %85 = vector.shape_cast %84 : vector<8xf32> to vector<8x1xf32>
    %cst_21 = arith.constant 1.250000e-01 : f32
    %86 = vector.broadcast %cst_21 : f32 to vector<8x1xf32>
    %87 = arith.mulf %85, %86 : vector<8x1xf32>
    %cst_22 = arith.constant 9.99999974E-6 : f32
    %88 = vector.broadcast %cst_22 : f32 to vector<8x1xf32>
    %89 = arith.addf %87, %88 : vector<8x1xf32>
    %90 = math.rsqrt %89 : vector<8x1xf32>
    %91 = vector.shape_cast %79 : vector<1x32xi1> to vector<1x32xi1>
    %92 = vector.broadcast %91 : vector<1x32xi1> to vector<8x32xi1>
    %93 = vector.shape_cast %90 : vector<8x1xf32> to vector<8x1xf32>
    %94 = vector.broadcast %93 : vector<8x1xf32> to vector<8x32xf32>
    %95 = arith.select %92, %94, %74 : vector<8x32xi1>, vector<8x32xf32>
    %c0_23 = arith.constant 0 : index
    %c0_24 = arith.constant 0 : index
    %96 = vector.load %arg3[%c0_23, %c0_24] : memref<1x32xf32, #tpu.memory_space<vmem>>, vector<1x32xf32>
    %97 = arith.mulf %8, %95 : vector<8x32xf32>
    %98 = vector.broadcast %96 : vector<1x32xf32> to vector<8x32xf32>
    %99 = arith.mulf %98, %97 : vector<8x32xf32>
    %c0_25 = arith.constant 0 : index
    %c0_26 = arith.constant 0 : index
    %100 = vector.load %arg4[%c0_25, %c0_26] : memref<8x32xf32, #tpu.memory_space<vmem>>, vector<8x32xf32>
    tpu.vector_store %arg4[%c0_25, %c0_26], %99 {strides = array<i32>} : memref<8x32xf32, #tpu.memory_space<vmem>>, vector<8x32xf32>,
    return
  }
  func.func @transform_0(%arg0: i32) -> (i32, i32) {
    %c0_i32 = arith.constant 0 : i32
    %c0_i32_0 = arith.constant 0 : i32
    return %arg0, %c0_i32 : i32, i32
  }
  func.func @transform_1(%arg0: i32) -> (i32, i32) {
    %c0_i32 = arith.constant 0 : i32
    %c0_i32_0 = arith.constant 0 : i32
    return %arg0, %c0_i32 : i32, i32
  }
  func.func @transform_2(%arg0: i32) -> (i32, i32) {
    %c0_i32 = arith.constant 0 : i32
    %c0_i32_0 = arith.constant 0 : i32
    %c0_i32_1 = arith.constant 0 : i32
    return %c0_i32, %c0_i32_0 : i32, i32
  }
  func.func @transform_3(%arg0: i32) -> (i32, i32) {
    %c0_i32 = arith.constant 0 : i32
    %c0_i32_0 = arith.constant 0 : i32
    return %arg0, %c0_i32 : i32, i32
  }
}

</mosaic_0001>

<llo_original>
// kernel: tpu_custom_call.1
$region0: #{tpu_custom_call.1}
  #allocation0 [shape = 'u32[]', space=smem, size = 0x4, offset = 0x4, fixed_abs, tag = 'smem constant byte address 0x4 - core index']
  #allocation1 [shape = 'u32[144,128]{1,0:T(1,128)}', space=vmem, size = 0x12000, scoped, tag = 'internal scratch']
  %s0 = inlined_call_operand.hbm [shape: f32[16,32], index: 0, kind: input, shape index: {}]
  %s1 = inlined_call_operand.hbm [shape: f32[16,32], index: 1, kind: input, shape index: {}]
  %s2 = inlined_call_operand.vmem [shape: f32[1,32], index: 2, kind: input, shape index: {}]
  %s3 = inlined_call_operand.hbm [shape: f32[16,32], index: 3, kind: output, shape index: {}]
  %s4 = sld [smem:[#allocation0]]
  $region53: #{tpu_custom_call.1} parent=0
    _
  %s6 = ssub.s32 1, %s4
  %s7 = scalar_select 0, %s6, %s4
  $region1: #{tpu_custom_call.1} parent=0
    #allocation2 [shape = 'u8[8192]{0}', space=vmem, size = 0x2000, scoped, tag = 'input window, operand 0']
    #allocation3 [shape = 's32[2]{0}', space=sflag, size = 0x8, scoped, tag = 'scoped memory for tpu_custom_call.1']
    #allocation4 [shape = 's32[2]{0}', space=sflag, size = 0x8, scoped, tag = 'scoped memory for tpu_custom_call.1']
    #allocation5 [shape = 'u8[8192]{0}', space=vmem, size = 0x2000, scoped, tag = 'input window, operand 1']
    #allocation6 [shape = 's32[2]{0}', space=sflag, size = 0x8, scoped, tag = 'scoped memory for tpu_custom_call.1']
    #allocation7 [shape = 'u8[8192]{0}', space=vmem, size = 0x2000, scoped, tag = 'output window, operand 0']
    %8 = vsyncpa [#allocation3], 0
    %s9 = scalar_lea.sflag [#allocation3], 1
    %10 = vsyncpa %s9, 0
    %11 = vsyncpa [#allocation6], 0
    %s12 = scalar_lea.sflag [#allocation6], 1
    %13 = vsyncpa %s12, 0
    %14 = vsyncpa [#allocation4], 0
    %s15 = scalar_lea.sflag [#allocation4], 1
    %16 = vsyncpa %s15, 0
    loop: start=0, step=1, limit=4
    $region2: #{tpu_custom_call.1} parent=1 // loop_pre_header
      _
    $region3: #{tpu_custom_call.1} parent=1 // loop_header
      %s18 = sphi 0, %s22
      %p19 = scmp.ge.s32.totalorder %s18, 4
      %s28 = sphi 0, %s30
      %s31 = sphi 0, %s28
      %s32 = sphi 0, %s31
      %s48 = sphi 0, %s32
      %s54 = sphi 0, %s56
      %s57 = sphi 0, %s54
      %s58 = sphi 0, %s57
      %s74 = sphi 0, %s58
      %s78 = sphi 0, %s78
      %s80 = sphi 0, %s78
      %s81 = sphi 0, %s80
      %s95 = sphi 0, %s81
      %s101 = sphi 0, %s103
      %s104 = sphi 0, %s101
      %s105 = sphi 0, %s104
      %s121 = sphi 0, %s105
    $region4: #{tpu_custom_call.1} parent=1 // loop_header_branch
      %21 = sbr.rel (%p19) target = $region8
    $region5: #{tpu_custom_call.1} parent=1 // loop_body
      %s23 = ssub.s32 %s18, 1
      %s24 = ssub.s32 %s18, 2
      %s25 = sadd.s32 %s18, 1
      %s26 = ssub.s32 %s18, %s25
      %p27 = scmp.eq.s32.totalorder %s26, 0
      %s29 = sadd.s32 %s28, 1
      %s30 = scalar_select %p27, %s28, %s29
      %p33 = pneg %p27
      %p34 = scmp.eq.s32.totalorder %s18, 1
      %p35 = por %p33, %p34
      %p36 = scmp.ne.s32.totalorder %s28, %s31
      %p37 = scmp.eq.s32.totalorder %s18, 0
      %p38 = por %p36, %p37
      %p39 = scmp.ne.s32.totalorder %s28, %s31
      %p40 = scmp.eq.s32.totalorder %s23, 1
      %p41 = por %p39, %p40
      %p42 = scmp.ne.s32.totalorder %s31, %s32
      %p43 = scmp.eq.s32.totalorder %s23, 0
      %p44 = por %p42, %p43
      %p45 = scmp.ne.s32.totalorder %s31, %s32
      %p46 = scmp.eq.s32.totalorder %s24, 1
      %p47 = por %p45, %p46
      %p49 = scmp.ne.s32.totalorder %s32, %s48
      %p50 = scmp.eq.s32.totalorder %s24, 0
      %p51 = por %p49, %p50
      %s52 = ssub.s32 %s18, %s25
      %p53 = scmp.eq.s32.totalorder %s52, 0
      %s55 = sadd.s32 %s54, 1
      %s56 = scalar_select %p53, %s54, %s55
      %p59 = pneg %p53
      %p60 = scmp.eq.s32.totalorder %s18, 1
      %p61 = por %p59, %p60
      %p62 = scmp.ne.s32.totalorder %s54, %s57
      %p63 = scmp.eq.s32.totalorder %s18, 0
      %p64 = por %p62, %p63
      %p65 = scmp.ne.s32.totalorder %s54, %s57
      %p66 = scmp.eq.s32.totalorder %s23, 1
      %p67 = por %p65, %p66
      %p68 = scmp.ne.s32.totalorder %s57, %s58
      %p69 = scmp.eq.s32.totalorder %s23, 0
      %p70 = por %p68, %p69
      %p71 = scmp.ne.s32.totalorder %s57, %s58
      %p72 = scmp.eq.s32.totalorder %s24, 1
      %p73 = por %p71, %p72
      %p75 = scmp.ne.s32.totalorder %s58, %s74
      %p76 = scmp.eq.s32.totalorder %s24, 0
      %p77 = por %p75, %p76
      %s79 = sadd.s32 %s78, 1
      %p82 = scmp.eq.s32.totalorder %s18, 1
      %p83 = scmp.ne.s32.totalorder %s78, %s80
      %p84 = scmp.eq.s32.totalorder %s18, 0
      %p85 = por %p83, %p84
      %p86 = scmp.ne.s32.totalorder %s78, %s80
      %p87 = scmp.eq.s32.totalorder %s23, 1
      %p88 = por %p86, %p87
      %p89 = scmp.ne.s32.totalorder %s80, %s81
      %p90 = scmp.eq.s32.totalorder %s23, 0
      %p91 = por %p89, %p90
      %p92 = scmp.ne.s32.totalorder %s80, %s81
      %p93 = scmp.eq.s32.totalorder %s24, 1
      %p94 = por %p92, %p93
      %p96 = scmp.ne.s32.totalorder %s81, %s95
      %p97 = scmp.eq.s32.totalorder %s24, 0
      %p98 = por %p96, %p97
      %s99 = ssub.s32 %s18, %s25
      %p100 = scmp.eq.s32.totalorder %s99, 0
      %s102 = sadd.s32 %s101, 1
      %s103 = scalar_select %p100, %s101, %s102
      %p106 = pneg %p100
      %p107 = scmp.eq.s32.totalorder %s18, 1
      %p108 = por %p106, %p107
      %p109 = scmp.ne.s32.totalorder %s101, %s104
      %p110 = scmp.eq.s32.totalorder %s18, 0
      %p111 = por %p109, %p110
      %p112 = scmp.ne.s32.totalorder %s101, %s104
      %p113 = scmp.eq.s32.totalorder %s23, 1
      %p114 = por %p112, %p113
      %p115 = scmp.ne.s32.totalorder %s104, %s105
      %p116 = scmp.eq.s32.totalorder %s23, 0
      %p117 = por %p115, %p116
      %p118 = scmp.ne.s32.totalorder %s104, %s105
      %p119 = scmp.eq.s32.totalorder %s24, 1
      %p120 = por %p118, %p119
      %p122 = scmp.ne.s32.totalorder %s105, %s121
      %p123 = scmp.eq.s32.totalorder %s24, 0
      %p124 = por %p122, %p123
      %p125 = scmp.le.s32.totalorder 1, %s18
      %p126 = scmp.lt.s32.totalorder %s18, 3
      %p127 = pnand %p125, %p126
      %p128 = pneg %p127
      // Predicated region
      $region9: #{tpu_custom_call.1} parent=5 // pred_check
        _
      $region10: #{tpu_custom_call.1} parent=5 // pred_check_branch
        %130 = sbr.rel (%p127) target = $region12
      $region11: #{tpu_custom_call.1} parent=5 // pred_region
        %s131 = ssub.s32 %s18, 1
        // Predicated region
        $region13: #{tpu_custom_call.1} parent=11 // pred_check
          %p132 = pneg %p91
        $region14: #{tpu_custom_call.1} parent=11 // pred_check_branch
          %134 = sbr.rel (%p132) target = $region16
        $region15: #{tpu_custom_call.1} parent=11 // pred_region
          _
        $region16: #{tpu_custom_call.1} parent=11 // pred_fallthru
          _
      $region12: #{tpu_custom_call.1} parent=5 // pred_fallthru
        _
      %p135 = scmp.lt.s32.totalorder %s18, 2
      // Predicated region
      $region17: #{tpu_custom_call.1} parent=5 // pred_check
        %p136 = pneg %p135
      $region18: #{tpu_custom_call.1} parent=5 // pred_check_branch
        %138 = sbr.rel (%p136) target = $region20
      $region19: #{tpu_custom_call.1} parent=5 // pred_region
        // Predicated region
        $region21: #{tpu_custom_call.1} parent=19 // pred_check
          %p139 = pneg %p38
        $region22: #{tpu_custom_call.1} parent=19 // pred_check_branch
          %141 = sbr.rel (%p139) target = $region24
        $region23: #{tpu_custom_call.1} parent=19 // pred_region
          %s142 = sand.u32 %s28, 1
          %s143 = scalar_lea.sflag [#allocation3], %s142
          %s144 = sand.u32 %s28, 1
          %s145 = smul.addr %s144, 8
          %s146 = scalar_lea.vmem [#allocation2], %s145
          %s148 = ssub.s32 128, 128
          %149 = vsyncadd %s143, %s148
          %s150 = smul.addr %s18, 128
          %s151 = scalar_lea.hbm %s0, %s150
          %s153 = sshll.u32 %s146, 4
          %s154 = int_to_ptr.vmem [resolvable:$true] %s153
          %156 = dma.hbm_to_vmem [thread:$0]  %s151, 128, %s154, %s143
        $region24: #{tpu_custom_call.1} parent=19 // pred_fallthru
          _
        // Predicated region
        $region25: #{tpu_custom_call.1} parent=19 // pred_check
          %p157 = pneg %p64
        $region26: #{tpu_custom_call.1} parent=19 // pred_check_branch
          %159 = sbr.rel (%p157) target = $region28
        $region27: #{tpu_custom_call.1} parent=19 // pred_region
          %s160 = sand.u32 %s54, 1
          %s161 = scalar_lea.sflag [#allocation6], %s160
          %s162 = sand.u32 %s54, 1
          %s163 = smul.addr %s162, 8
          %s164 = scalar_lea.vmem [#allocation5], %s163
          %s166 = ssub.s32 128, 128
          %167 = vsyncadd %s161, %s166
          %s168 = smul.addr %s18, 128
          %s169 = scalar_lea.hbm %s1, %s168
          %s171 = sshll.u32 %s164, 4
          %s172 = int_to_ptr.vmem [resolvable:$true] %s171
          %174 = dma.hbm_to_vmem [thread:$0]  %s169, 128, %s172, %s161
        $region28: #{tpu_custom_call.1} parent=19 // pred_fallthru
          _
      $region20: #{tpu_custom_call.1} parent=5 // pred_fallthru
        _
      %p175 = scmp.le.s32.totalorder 1, %s18
      %p176 = scmp.lt.s32.totalorder %s18, 3
      %p177 = pnand %p175, %p176
      %p178 = pneg %p177
      // Predicated region
      $region29: #{tpu_custom_call.1} parent=5 // pred_check
        _
      $region30: #{tpu_custom_call.1} parent=5 // pred_check_branch
        %180 = sbr.rel (%p177) target = $region32
      $region31: #{tpu_custom_call.1} parent=5 // pred_region
        %s181 = ssub.s32 %s18, 1
        %s182 = sand.u32 %s31, 1
        %s183 = scalar_lea.sflag [#allocation3], %s182
        %s184 = sand.u32 %s31, 1
        %s185 = smul.addr %s184, 8
        %s186 = scalar_lea.vmem [#allocation2], %s185
        // Predicated region
        $region33: #{tpu_custom_call.1} parent=31 // pred_check
          %p187 = pneg %p44
        $region34: #{tpu_custom_call.1} parent=31 // pred_check_branch
          %189 = sbr.rel (%p187) target = $region36
        $region35: #{tpu_custom_call.1} parent=31 // pred_region
          %190 = dma.done %s183, 128
        $region36: #{tpu_custom_call.1} parent=31 // pred_fallthru
          _
        %s191 = sand.u32 %s57, 1
        %s192 = scalar_lea.sflag [#allocation6], %s191
        %s193 = sand.u32 %s57, 1
        %s194 = smul.addr %s193, 8
        %s195 = scalar_lea.vmem [#allocation5], %s194
        // Predicated region
        $region37: #{tpu_custom_call.1} parent=31 // pred_check
          %p196 = pneg %p70
        $region38: #{tpu_custom_call.1} parent=31 // pred_check_branch
          %198 = sbr.rel (%p196) target = $region40
        $region39: #{tpu_custom_call.1} parent=31 // pred_region
          %199 = dma.done %s192, 128
        $region40: #{tpu_custom_call.1} parent=31 // pred_fallthru
          _
        %s200 = sand.u32 %s31, 1
        %s201 = scalar_lea.sflag [#allocation3], %s200
        %s202 = sand.u32 %s31, 1
        %s203 = smul.addr %s202, 8
        %s204 = scalar_lea.vmem [#allocation2], %s203
        %p205 = pneg %p44
        %p206 = pneg %p41
        %s207 = sand.u32 %s57, 1
        %s208 = scalar_lea.sflag [#allocation6], %s207
        %s209 = sand.u32 %s57, 1
        %s210 = smul.addr %s209, 8
        %s211 = scalar_lea.vmem [#allocation5], %s210
        %p212 = pneg %p70
        %p213 = pneg %p67
        %p214 = pneg %p91
        %p215 = pneg %p88
        %p216 = pneg %p117
        %p217 = pneg %p114
        %s218 = sand.u32 %s104, 1
        %s219 = scalar_lea.sflag [#allocation4], %s218
        %s220 = sand.u32 %s104, 1
        %s221 = smul.addr %s220, 8
        %s222 = scalar_lea.vmem [#allocation7], %s221
        %v223 = vld [vmem:[%s186] sm:$0xff]
        %v224 = vld [vmem:[%s195] sm:$0xff]
        %v225 = vxor.u32 %v224, 2147483648
        %v226 = vmul.f32 %v225, 1.442695
        %v227 = vpow.pop %v226
        %v228 = vadd.f32 %v227, 1.0
        %v229 = vrcp.pop %v228
        %v230 = vmul.f32 1.0, %v229
        %v231 = vmul.f32 %v224, %v230
        %v232 = vmul.f32 %v223, %v231
        %v233 = vmul.f32 %v232, %v232
        %v234 = vlaneseq
        %v235 = vand.u32 %v234, 127
        %vm236 = vcmp.ge.s32.totalorder %v235, 0
        %vm237 = vcmp.lt.s32.totalorder %v235, 8
        %vm238 = vmand %vm236, %vm237
        %v239 = vsel %vm238, 1, 0
        %vm240 = vcmp.eq.s32.totalorder %v239, 1
        %v241 = vsel %vm240, %v233, 0.0
        %vm242 = vcmask 261120
        %v243 = vsel %vm242, %v241, 0.0
        %244 = vadd.xlane.f32.xlu0 %v243
        %v245 = vpop.xlane.xlu0 %244
        %v246 = vmul.f32 %v245, 0.125
        %v247 = vadd.f32 %v246, 1e-05
        %v248 = vrsqrt.pop %v247
        %v249 = vsel %vm240, %v248, 0.0
        %vm250 = vcmp.ge.s32.totalorder %v235, 8
        %vm251 = vcmp.lt.s32.totalorder %v235, 16
        %vm252 = vmand %vm250, %vm251
        %v253 = vsel %vm252, 1, 0
        %vm254 = vcmp.eq.s32.totalorder %v253, 1
        %v255 = vsel %vm254, %v233, 0.0
        %v256 = vsel %vm242, %v255, 0.0
        %257 = vadd.xlane.f32.xlu0 %v256
        %v258 = vpop.xlane.xlu0 %257
        %v259 = vmul.f32 %v258, 0.125
        %v260 = vadd.f32 %v259, 1e-05
        %v261 = vrsqrt.pop %v260
        %v262 = vsel %vm254, %v261, %v249
        %vm263 = vcmp.ge.s32.totalorder %v235, 16
        %vm264 = vcmp.lt.s32.totalorder %v235, 24
        %vm265 = vmand %vm263, %vm264
        %v266 = vsel %vm265, 1, 0
        %vm267 = vcmp.eq.s32.totalorder %v266, 1
        %v268 = vsel %vm267, %v233, 0.0
        %v269 = vsel %vm242, %v268, 0.0
        %270 = vadd.xlane.f32.xlu0 %v269
        %v271 = vpop.xlane.xlu0 %270
        %v272 = vmul.f32 %v271, 0.125
        %v273 = vadd.f32 %v272, 1e-05
        %v274 = vrsqrt.pop %v273
        %v275 = vsel %vm267, %v274, %v262
        %vm276 = vcmp.ge.s32.totalorder %v235, 24
        %vm277 = vcmp.lt.s32.totalorder %v235, 32
        %vm278 = vmand %vm276, %vm277
        %v279 = vsel %vm278, 1, 0
        %vm280 = vcmp.eq.s32.totalorder %v279, 1
        %v281 = vsel %vm280, %v233, 0.0
        %v282 = vsel %vm242, %v281, 0.0
        %283 = vadd.xlane.f32.xlu0 %v282
        %v284 = vpop.xlane.xlu0 %283
        %v285 = vmul.f32 %v284, 0.125
        %v286 = vadd.f32 %v285, 1e-05
        %v287 = vrsqrt.pop %v286
        %v288 = vsel %vm280, %v287, %v275
        %v289 = vld [vmem:[%s2] sm:$0x1]
        %v290 = vmul.f32 %v232, %v288
        %v292 = vlaneseq
        %v293 = vshrl.u32 %v292, 7
        %v294 = vsub.s32 0, %v293
        %v295 = vrot.slane %v289, %v294
        %v297 = vmul.f32 %v295, %v290
        %298 = vst.msk [vmem:[%s222] sm:$0xff] %vm242, %v297
        %s299 = sand.u32 %s104, 1
        %s300 = scalar_lea.sflag [#allocation4], %s299
        %s301 = sand.u32 %s104, 1
        %s302 = smul.addr %s301, 8
        %s303 = scalar_lea.vmem [#allocation7], %s302
        // Predicated region
        $region41: #{tpu_custom_call.1} parent=31 // pred_check
          %p304 = pneg %p114
        $region42: #{tpu_custom_call.1} parent=31 // pred_check_branch
          %306 = sbr.rel (%p304) target = $region44
        $region43: #{tpu_custom_call.1} parent=31 // pred_region
          %s308 = ssub.s32 128, 128
          %309 = vsyncadd %s300, %s308
          %s310 = smul.addr %s23, 128
          %s311 = scalar_lea.hbm %s3, %s310
          %s313 = sshll.u32 %s303, 4
          %s314 = int_to_ptr.vmem [resolvable:$true] %s313
          %316 = dma.vmem_to_hbm [thread:$0]  %s314, 128, %s311, %s300
        $region44: #{tpu_custom_call.1} parent=31 // pred_fallthru
          _
      $region32: #{tpu_custom_call.1} parent=5 // pred_fallthru
        _
      %p317 = scmp.le.s32.totalorder 2, %s18
      // Predicated region
      $region45: #{tpu_custom_call.1} parent=5 // pred_check
        %p318 = pneg %p317
      $region46: #{tpu_custom_call.1} parent=5 // pred_check_branch
        %320 = sbr.rel (%p318) target = $region48
      $region47: #{tpu_custom_call.1} parent=5 // pred_region
        %s321 = ssub.s32 %s18, 2
        // Predicated region
        $region49: #{tpu_custom_call.1} parent=47 // pred_check
          %p322 = pneg %p120
        $region50: #{tpu_custom_call.1} parent=47 // pred_check_branch
          %324 = sbr.rel (%p322) target = $region52
        $region51: #{tpu_custom_call.1} parent=47 // pred_region
          %s325 = sand.u32 %s105, 1
          %s326 = scalar_lea.sflag [#allocation4], %s325
          %s327 = sand.u32 %s105, 1
          %s328 = smul.addr %s327, 8
          %s329 = scalar_lea.vmem [#allocation7], %s328
          %330 = dma.done %s326, 128
        $region52: #{tpu_custom_call.1} parent=47 // pred_fallthru
          _
      $region48: #{tpu_custom_call.1} parent=5 // pred_fallthru
        _
    $region6: #{tpu_custom_call.1} parent=1 // loop_footer
      %s22 = sadd.s32 1, %s18
    $region7: #{tpu_custom_call.1} parent=1 // loop_footer_branch
      %17 = sbr.rel target = $region3
    $region8: #{tpu_custom_call.1} parent=1 // loop_exit
      _
    %331 = vsyncpa [#allocation3], 1
    %s332 = scalar_lea.sflag [#allocation3], 1
    %333 = vsyncpa %s332, 1
    %334 = vsyncpa [#allocation6], 1
    %s335 = scalar_lea.sflag [#allocation6], 1
    %336 = vsyncpa %s335, 1
    %337 = vsyncpa [#allocation4], 1
    %s338 = scalar_lea.sflag [#allocation4], 1
    %339 = vsyncpa %s338, 1

</llo_original>
